<compile_context>
chip_gen: v5e
topology: v5e:2x2
jax: 0.10.0
libtpu: 0.0.40
codegen_flags: <defaults>
</compile_context>

<pallas_src>
import functools

import jax
import jax.numpy as jnp
from jax import lax
from jax.experimental import pallas as pl
from jax.experimental.pallas import tpu as pltpu


def _round_up(a, m):
    return ((a + m - 1) // m) * m


def deepsets_kernel(x_ref, w1_ref, w2_ref, w3_ref, o_ref, *, set_size):
    # x_ref : (TB * S, D)     flattened batch tile of input sets (last dim = full D)
    # w1_ref: (D, H_phi)      phi weight, (in, out) layout
    # w2_ref: (H_phi, H_rho)  rho.fc1 weight, (in, out) layout
    # w3_ref: (1, H_rho)      rho.fc2 weight as a row vector
    # o_ref : (1, TB)         lane-packed output row for this batch tile
    rows, _ = x_ref.shape
    tb = rows // set_size

    # phi: one large-M 2-D matmul on the MXU, f32 accumulation, then relu
    # (LittleBlock with squared=False).
    z = jnp.dot(x_ref[...], w1_ref[...], preferred_element_type=jnp.float32)
    z = jnp.maximum(z, 0.0)                              # (TB*S, H_phi), f32

    # DeepSets pooling: sum over the set dimension. Regrouping the leading dim is
    # layout-free; S is a multiple of 8 in the demo so the regroup is tile-aligned.
    zs = jnp.sum(z.reshape(tb, set_size, -1), axis=1)    # (TB, H_phi), f32

    # rho.fc1 + relu (keep zs in f32; no accumulator downcast).
    h = jnp.dot(zs, w2_ref[...], preferred_element_type=jnp.float32)
    h = jnp.maximum(h, 0.0)                              # (TB, H_rho), f32

    # rho.fc2 (output_dim = 1), produced directly lane-dense:
    # (1, H_rho) contracted against (TB, H_rho) on the last dim -> (1, TB).
    out_row = lax.dot_general(
        w3_ref[...].astype(jnp.float32), h,
        dimension_numbers=(((1,), (1,)), ((), ())),
        preferred_element_type=jnp.float32)              # (1, TB)

    o_ref[...] = out_row.astype(o_ref.dtype)


def _pick_batch_tile(B, S, D, itemsize):
    """Choose (TB, grid) so each step moves a big chunk of x while fitting VMEM."""
    # Lane-padded f32 VMEM bytes per batch row: x block (double-buffered) + z temp.
    row_vmem = S * 128 * 4 * 3
    vmem_budget = 28 << 20                      # leaves headroom on v7x's 64 MiB
    tb_cap = max(8, vmem_budget // row_vmem)

    if B <= min(tb_cap, 256):
        return B, 1                             # whole batch as one full-array block

    tb_cap = max(128, (tb_cap // 128) * 128)
    # Aim for >= ~2 MiB of real x bytes per grid step.
    tb_target = _round_up(max(1, (2 << 20) // max(1, S * D * itemsize)), 128)
    tb = min(tb_cap, tb_target, 4096)
    # Keep >= 2 grid steps so the "parallel" batch axis spans both TCs on v7x.
    tb = min(tb, _round_up(pl.cdiv(B, 2), 128))
    tb = max(tb, 128)
    return tb, pl.cdiv(B, tb)


def deepsets_forward(x, w1, w2, w3):
    """x: (B, S, D); w1: (H_phi, D); w2: (H_rho, H_phi); w3: (1, H_rho) -> (B, 1).

    Weights are in PyTorch nn.Linear (out_features, in_features) layout, bias=False.
    """
    B, S, D = x.shape
    H_phi = w1.shape[0]
    H_rho = w2.shape[0]

    # Free row-major reshape — no extra HBM pass over x (unlike padding it).
    x_flat = x.reshape(B * S, D)

    # Pre-transpose the (tiny) weights to (in, out) layout once, outside the kernel.
    w1_t = jnp.transpose(w1)             # (D, H_phi)
    w2_t = jnp.transpose(w2)             # (H_phi, H_rho)
    w3_row = w3.reshape(1, H_rho)        # (1, H_rho)

    TB, grid = _pick_batch_tile(B, S, D, x.dtype.itemsize)
    n_cols = grid * TB

    flops = 2 * B * S * D * H_phi + 2 * B * H_phi * H_rho + 2 * B * H_rho
    bytes_accessed = (x_flat.size * x_flat.dtype.itemsize
                      + (w1_t.size + w2_t.size + w3_row.size) * w1_t.dtype.itemsize
                      + n_cols * x.dtype.itemsize)

    kernel = functools.partial(deepsets_kernel, set_size=S)

    out_row = pl.pallas_call(
        kernel,
        out_shape=jax.ShapeDtypeStruct((1, n_cols), x.dtype),
        grid=(grid,),
        in_specs=[
            pl.BlockSpec((TB * S, D), lambda b: (b, 0)),    # x tile (last dim = full D)
            pl.BlockSpec((D, H_phi), lambda b: (0, 0)),     # weights stay resident
            pl.BlockSpec((H_phi, H_rho), lambda b: (0, 0)),
            pl.BlockSpec((1, H_rho), lambda b: (0, 0)),
        ],
        out_specs=pl.BlockSpec((1, TB), lambda b: (0, b)),  # lane-packed output row
        compiler_params=pltpu.CompilerParams(
            dimension_semantics=("parallel",),              # batch split across TCs
            vmem_limit_bytes=48 << 20,                      # above v5e/v6e scoped default
        ),
        cost_estimate=pl.CostEstimate(
            flops=flops, transcendentals=0, bytes_accessed=bytes_accessed),
    )(x_flat, w1_t, w2_t, w3_row)

    # Boundary-block columns (>= B) are garbage by construction; slice them off.
    return out_row[0, :B].reshape(B, 1)


def reference_forward(x, w1, w2, w3):
    B, S, D = x.shape
    z = jnp.maximum(x.reshape(B * S, D) @ w1.T, 0.0)
    zs = jnp.sum(z.reshape(B, S, -1), axis=1)
    h = jnp.maximum(zs @ w2.T, 0.0)
    return h @ w3.T


if __name__ == "__main__":
    # DeepSets(input_dim=4, hidden_dim_phi=32, hidden_dim_rho=32); Symmetric adds 1 -> D = 5.
    input_dim = 4
    hidden_dim_phi = 32
    hidden_dim_rho = 32
    output_dim = 1
    D = input_dim + 1
    B, S = 2, 8                # batch, set size

    key = jax.random.PRNGKey(0)
    kx, k1, k2, k3 = jax.random.split(key, 4)

    x = jax.random.normal(kx, (B, S, D), dtype=jnp.float32)
    # Weights in PyTorch nn.Linear layout (out_features, in_features), bias=False.
    w1 = jax.random.normal(k1, (hidden_dim_phi, D), dtype=jnp.float32) * 0.1
    w2 = jax.random.normal(k2, (hidden_dim_rho, hidden_dim_phi), dtype=jnp.float32) * 0.1
    w3 = jax.random.normal(k3, (output_dim, hidden_dim_rho), dtype=jnp.float32) * 0.1

    out = deepsets_forward(x, w1, w2, w3)
    out = jax.block_until_ready(out)

    ref = reference_forward(x, w1, w2, w3)
    assert out.shape == (B, 1), out.shape
    assert jnp.allclose(out, ref, atol=1e-5, rtol=1e-5), float(jnp.max(jnp.abs(out - ref)))

    print("KERNEL_OK")
</pallas_src>

<mosaic_0001>
module attributes {stable_mosaic.version = 11 : i64} {
  func.func @deepsets_kernel(%arg0: i32, %arg1: memref<16x5xf32, #tpu.memory_space<vmem>>, %arg2: memref<5x32xf32, #tpu.memory_space<vmem>>, %arg3: memref<32x32xf32, #tpu.memory_space<vmem>>, %arg4: memref<1x32xf32, #tpu.memory_space<vmem>>, %arg5: memref<1x2xf32, #tpu.memory_space<vmem>>) attributes {dimension_semantics = [#tpu.dimension_semantics<parallel>], iteration_bounds = array<i64: 1>, scalar_prefetch = 0 : i64, scratch_operands = 0 : i64, tpu.core_type = #tpu.core_type<tc>, window_params = [{transform_indices = @transform_0, window_bounds = array<i64: 16, 5>}, {pipeline_mode = #tpu.pipeline_mode<synchronous>, transform_indices = @transform_1, window_bounds = array<i64: 5, 32>}, {pipeline_mode = #tpu.pipeline_mode<synchronous>, transform_indices = @transform_2, window_bounds = array<i64: 32, 32>}, {pipeline_mode = #tpu.pipeline_mode<synchronous>, transform_indices = @transform_3, window_bounds = array<i64: 1, 32>}, {transform_indices = @transform_4, window_bounds = array<i64: 1, 2>}]} {
    %c0 = arith.constant 0 : index
    %c0_0 = arith.constant 0 : index
    %0 = vector.load %arg1[%c0, %c0_0] : memref<16x5xf32, #tpu.memory_space<vmem>>, vector<16x5xf32>
    %c0_1 = arith.constant 0 : index
    %c0_2 = arith.constant 0 : index
    %1 = vector.load %arg2[%c0_1, %c0_2] : memref<5x32xf32, #tpu.memory_space<vmem>>, vector<5x32xf32>
    %cst = arith.constant dense<0.000000e+00> : vector<16x32xf32>
    %2 = tpu.matmul %0, %1, %cst {dimension_numbers = #tpu.dot_dimension_numbers<[1], [0], [0], [1], [0, 0, 1, 1], [], []>} : vector<16x5xf32>, vector<5x32xf32>, vector<16x32xf32> -> vector<16x32xf32>
    %cst_3 = arith.constant 0.000000e+00 : f32
    %3 = vector.broadcast %cst_3 : f32 to vector<16x32xf32>
    %4 = arith.maximumf %2, %3 : vector<16x32xf32>
    %5 = vector.shape_cast %4 : vector<16x32xf32> to vector<2x8x32xf32>
    %cst_4 = arith.constant dense<0.000000e+00> : vector<2x32xf32>
    %6 = vector.multi_reduction <add>, %5, %cst_4 [1] : vector<2x8x32xf32> to vector<2x32xf32>
    %c0_5 = arith.constant 0 : index
    %c0_6 = arith.constant 0 : index
    %7 = vector.load %arg3[%c0_5, %c0_6] : memref<32x32xf32, #tpu.memory_space<vmem>>, vector<32x32xf32>
    %cst_7 = arith.constant dense<0.000000e+00> : vector<2x32xf32>
    %8 = tpu.matmul %6, %7, %cst_7 {dimension_numbers = #tpu.dot_dimension_numbers<[1], [0], [0], [1], [0, 0, 1, 1], [], []>} : vector<2x32xf32>, vector<32x32xf32>, vector<2x32xf32> -> vector<2x32xf32>
    %cst_8 = arith.constant 0.000000e+00 : f32
    %9 = vector.broadcast %cst_8 : f32 to vector<2x32xf32>
    %10 = arith.maximumf %8, %9 : vector<2x32xf32>
    %c0_9 = arith.constant 0 : index
    %c0_10 = arith.constant 0 : index
    %11 = vector.load %arg4[%c0_9, %c0_10] : memref<1x32xf32, #tpu.memory_space<vmem>>, vector<1x32xf32>
    %cst_11 = arith.constant dense<0.000000e+00> : vector<1x2xf32>
    %12 = tpu.matmul %11, %10, %cst_11 {dimension_numbers = #tpu.dot_dimension_numbers<[1], [1], [0], [0], [0, 0, 1, 0], [], []>} : vector<1x32xf32>, vector<2x32xf32>, vector<1x2xf32> -> vector<1x2xf32>
    %c0_12 = arith.constant 0 : index
    %c0_13 = arith.constant 0 : index
    %13 = vector.load %arg5[%c0_12, %c0_13] : memref<1x2xf32, #tpu.memory_space<vmem>>, vector<1x2xf32>
    tpu.vector_store %arg5[%c0_12, %c0_13], %12 {strides = array<i32>} : memref<1x2xf32, #tpu.memory_space<vmem>>, vector<1x2xf32>,
    return
  }
  func.func @transform_0(%arg0: i32) -> (i32, i32) {
    %c0_i32 = arith.constant 0 : i32
    %c0_i32_0 = arith.constant 0 : i32
    return %arg0, %c0_i32 : i32, i32
  }
  func.func @transform_1(%arg0: i32) -> (i32, i32) {
    %c0_i32 = arith.constant 0 : i32
    %c0_i32_0 = arith.constant 0 : i32
    %c0_i32_1 = arith.constant 0 : i32
    return %c0_i32, %c0_i32_0 : i32, i32
  }
  func.func @transform_2(%arg0: i32) -> (i32, i32) {
    %c0_i32 = arith.constant 0 : i32
    %c0_i32_0 = arith.constant 0 : i32
    %c0_i32_1 = arith.constant 0 : i32
    return %c0_i32, %c0_i32_0 : i32, i32
  }
  func.func @transform_3(%arg0: i32) -> (i32, i32) {
    %c0_i32 = arith.constant 0 : i32
    %c0_i32_0 = arith.constant 0 : i32
    %c0_i32_1 = arith.constant 0 : i32
    return %c0_i32, %c0_i32_0 : i32, i32
  }
  func.func @transform_4(%arg0: i32) -> (i32, i32) {
    %c0_i32 = arith.constant 0 : i32
    %c0_i32_0 = arith.constant 0 : i32
    return %c0_i32, %arg0 : i32, i32
  }
}

</mosaic_0001>

<llo_original>
// kernel: tpu_custom_call.1
$region0: #{tpu_custom_call.1}
  #allocation0 [shape = 'u32[]', space=smem, size = 0x4, offset = 0x4, fixed_abs, tag = 'smem constant byte address 0x4 - core index']
  #allocation1 [shape = 'u32[72,128]{1,0:T(1,128)}', space=vmem, size = 0x9000, scoped, tag = 'internal scratch']
  %s0 = inlined_call_operand.vmem [shape: f32[16,5], index: 0, kind: input, shape index: {}]
  %s1 = inlined_call_operand.vmem [shape: f32[5,32], index: 1, kind: input, shape index: {}]
  %s2 = inlined_call_operand.hbm [shape: f32[32,32], index: 2, kind: input, shape index: {}]
  %s3 = inlined_call_operand.vmem [shape: f32[1,32], index: 3, kind: input, shape index: {}]
  %s4 = inlined_call_operand.hbm [shape: f32[1,2], index: 4, kind: output, shape index: {}]
  %s5 = sld [smem:[#allocation0]]
  $region30: #{tpu_custom_call.1} parent=0
    _
  %s7 = ssub.s32 1, %s5
  %s8 = scalar_select 0, %s7, %s5
  $region1: #{tpu_custom_call.1} parent=0
    #allocation2 [shape = 'u8[16384]{0}', space=vmem, size = 0x4000, scoped, tag = 'input window, operand 2, single buffered']
    #allocation3 [shape = 's32[1]{0}', space=sflag, size = 0x4, scoped, tag = 'scoped memory for tpu_custom_call.1']
    #allocation4 [shape = 's32[1]{0}', space=sflag, size = 0x4, scoped, tag = 'scoped memory for tpu_custom_call.1']
    #allocation5 [shape = 'u8[512]{0}', space=vmem, size = 0x400, scoped, tag = 'output window, operand 0, single buffered']
    %9 = vsyncpa [#allocation3], 0
    %10 = vsyncpa [#allocation4], 0
    // Predicated region
    $region2: #{tpu_custom_call.1} parent=1 // pred_check
      _
    $region3: #{tpu_custom_call.1} parent=1 // pred_check_branch
      %12 = sbr.rel (0) target = $region5
    $region4: #{tpu_custom_call.1} parent=1 // pred_region
      _
    $region5: #{tpu_custom_call.1} parent=1 // pred_fallthru
      _
    // Predicated region
    $region6: #{tpu_custom_call.1} parent=1 // pred_check
      _
    $region7: #{tpu_custom_call.1} parent=1 // pred_check_branch
      %14 = sbr.rel (0) target = $region9
    $region8: #{tpu_custom_call.1} parent=1 // pred_region
      _
    $region9: #{tpu_custom_call.1} parent=1 // pred_fallthru
      _
    // Predicated region
    $region10: #{tpu_custom_call.1} parent=1 // pred_check
      _
    $region11: #{tpu_custom_call.1} parent=1 // pred_check_branch
      %16 = sbr.rel (0) target = $region13
    $region12: #{tpu_custom_call.1} parent=1 // pred_region
      %18 = vsyncadd [#allocation3], 0
      %s19 = sshll.u32 %s2, 4
      %s20 = int_to_ptr.hbm [resolvable:$true] %s19
      %s21 = sshll.u32 [#allocation2], 4
      %s22 = int_to_ptr.vmem [resolvable:$true] %s21
      %27 = dma.hbm_to_vmem [thread:$0]  %s20, 512, %s22, [#allocation3], 128, 128, 8
    $region13: #{tpu_custom_call.1} parent=1 // pred_fallthru
      _
    // Predicated region
    $region14: #{tpu_custom_call.1} parent=1 // pred_check
      _
    $region15: #{tpu_custom_call.1} parent=1 // pred_check_branch
      %29 = sbr.rel (0) target = $region17
    $region16: #{tpu_custom_call.1} parent=1 // pred_region
      _
    $region17: #{tpu_custom_call.1} parent=1 // pred_fallthru
      _
    // Predicated region
    $region18: #{tpu_custom_call.1} parent=1 // pred_check
      _
    $region19: #{tpu_custom_call.1} parent=1 // pred_check_branch
      %31 = sbr.rel (0) target = $region21
    $region20: #{tpu_custom_call.1} parent=1 // pred_region
      %33 = dma.done [#allocation3], 512
    $region21: #{tpu_custom_call.1} parent=1 // pred_fallthru
      _
    %v34 = vld [vmem:[%s0] sm:$0xff]
    %v35 = vld [vmem:[%s0 + $0x8] sm:$0xff]
    %v36 = vld [vmem:[%s1] sm:$0x1f]
    %vm37 = vcmask 39936
    %v39 = vsel %vm37, %v34, 0
    %v42 = vsel %vm37, %v35, 0
    %vm44 = vcmask 1044480
    %v46 = vsel %vm44, %v36, 0
    %48 = vmatpush.msra.mxu0 0.0
    %49 = vmatpush.msra.mxu0 0.0
    %50 = vmatpush.msra.mxu0 0.0
    %51 = vmatpush.msra.mxu0 0.0
    %52 = vmatpush.msra.mxu0 0.0
    %53 = vmatpush.msra.mxu0 0.0
    %54 = vmatpush.msra.mxu0 0.0
    %55 = vmatpush.msra.mxu0 0.0
    %56 = vmatpush.msra.mxu0 0.0
    %57 = vmatpush.msra.mxu0 0.0
    %58 = vmatpush.msra.mxu0 0.0
    %59 = vmatpush.msra.mxu0 0.0
    %60 = vmatpush.msra.mxu0 0.0
    %61 = vmatpush.msra.mxu0 0.0
    %62 = vmatpush.msra.mxu0 0.0
    %63 = vmatpush.msra.mxu0 %v46
    %64 = vmatmul.f32.gmra.mxu0 %v39
    %v65 = vpop.f32.mrf.mxu0
    %v66 = vadd.f32 0.0, %v65
    %67 = vmatmul.f32.gmra.mxu0 %v42
    %v68 = vpop.f32.mrf.mxu0
    %v69 = vadd.f32 0.0, %v68
    %70 = vdwg.mxu0
    %v71 = vmax.f32 %v66, 0.0
    %v72 = vmax.f32 %v69, 0.0
    %vm73 = vcmask 261120
    %v74 = vsel %vm73, %v71, 0.0
    %v75 = vrot.slane %v74, 4
    %v76 = vadd.f32 %v74, %v75
    %v77 = vrot.slane %v76, 2
    %v78 = vadd.f32 %v76, %v77
    %v79 = vrot.slane %v78, 1
    %v80 = vadd.f32 %v78, %v79
    %v81 = vsel %vm73, %v72, 0.0
    %v82 = vrot.slane %v81, 4
    %v83 = vadd.f32 %v81, %v82
    %v84 = vrot.slane %v83, 2
    %v85 = vadd.f32 %v83, %v84
    %v86 = vrot.slane %v85, 1
    %v87 = vadd.f32 %v85, %v86
    %v88 = vld [vmem:[#allocation2] sm:$0xff]
    %v89 = vld [vmem:[#allocation2 + $0x8] sm:$0xff]
    %v90 = vld [vmem:[#allocation2 + $0x10] sm:$0xff]
    %v91 = vld [vmem:[#allocation2 + $0x18] sm:$0xff]
    %vm94 = vcmask 1041409
    %v95 = vsel %vm94, %v87, %v80
    %v96 = vsel %vm73, %v95, 0
    %98 = vmatpush.msra.mxu0 0.0
    %99 = vmatpush.msra.mxu0 0.0
    %100 = vmatpush.msra.mxu0 0.0
    %101 = vmatpush.msra.mxu0 0.0
    %102 = vmatpush.msra.mxu0 0.0
    %103 = vmatpush.msra.mxu0 0.0
    %104 = vmatpush.msra.mxu0 0.0
    %105 = vmatpush.msra.mxu0 0.0
    %106 = vmatpush.msra.mxu0 0.0
    %107 = vmatpush.msra.mxu0 0.0
    %108 = vmatpush.msra.mxu0 0.0
    %109 = vmatpush.msra.mxu0 0.0
    %110 = vmatpush.msra.mxu0 %v91
    %111 = vmatpush.msra.mxu0 %v90
    %112 = vmatpush.msra.mxu0 %v89
    %113 = vmatpush.msra.mxu0 %v88
    %114 = vmatmul.f32.gmra.mxu0 %v96
    %v115 = vpop.f32.mrf.mxu0
    %v116 = vadd.f32 0.0, %v115
    %117 = vdwg.mxu0
    %v118 = vmax.f32 %v116, 0.0
    %v119 = vld [vmem:[%s3] sm:$0x1]
    %v121 = vsel %vm73, %v119, 0
    %v124 = vsel %vm73, %v118, 0
    %126 = vmatpush.xpose.msra.mxu0 0.0
    %127 = vmatpush.xpose.msra.mxu0 0.0
    %128 = vmatpush.xpose.msra.mxu0 0.0
    %129 = vmatpush.xpose.msra.mxu0 0.0
    %130 = vmatpush.xpose.msra.mxu0 0.0
    %131 = vmatpush.xpose.msra.mxu0 0.0
    %132 = vmatpush.xpose.msra.mxu0 0.0
    %133 = vmatpush.xpose.msra.mxu0 0.0
    %134 = vmatpush.xpose.msra.mxu0 0.0
    %135 = vmatpush.xpose.msra.mxu0 0.0
    %136 = vmatpush.xpose.msra.mxu0 0.0
    %137 = vmatpush.xpose.msra.mxu0 0.0
    %138 = vmatpush.xpose.msra.mxu0 0.0
    %139 = vmatpush.xpose.msra.mxu0 0.0
    %140 = vmatpush.xpose.msra.mxu0 0.0
    %141 = vmatpush.xpose.msra.mxu0 %v124
    %142 = vmatmul.f32.gmra.mxu0 %v121
    %v143 = vpop.f32.mrf.mxu0
    %v144 = vadd.f32 0.0, %v143
    %145 = vdwg.mxu0
    %vm146 = vcmask 8192
    %147 = vst.msk [vmem:[#allocation5] sm:$0x1] %vm146, %v144
    // Predicated region
    $region22: #{tpu_custom_call.1} parent=1 // pred_check
      _
    $region23: #{tpu_custom_call.1} parent=1 // pred_check_branch
      %149 = sbr.rel (0) target = $region25
    $region24: #{tpu_custom_call.1} parent=1 // pred_region
      %151 = vsyncadd [#allocation4], 0
      %s153 = sshll.u32 [#allocation5], 4
      %s154 = int_to_ptr.vmem [resolvable:$true] %s153
      %s155 = sshll.u32 %s4, 4
      %s156 = int_to_ptr.hbm [resolvable:$true] %s155
      %158 = dma.vmem_to_hbm [thread:$0]  %s154, 16, %s156, [#allocation4]
    $region25: #{tpu_custom_call.1} parent=1 // pred_fallthru
      _
    // Predicated region
    $region26: #{tpu_custom_call.1} parent=1 // pred_check
      _
    $region27: #{tpu_custom_call.1} parent=1 // pred_check_branch
      %160 = sbr.rel (0) target = $region29
    $region28: #{tpu_custom_call.1} parent=1 // pred_region
      %162 = dma.done [#allocation4], 16
    $region29: #{tpu_custom_call.1} parent=1 // pred_fallthru
      _
    %163 = vsyncpa [#allocation3], 1
    %164 = vsyncpa [#allocation4], 1

</llo_original>
